<compile_context>
chip_gen: v6e
topology: v6e:2x2x1
jax: 0.10.0
libtpu: 0.0.40
codegen_flags: <defaults>
</compile_context>

<pallas_src>
import math

import jax
import jax.numpy as jnp
from jax import lax
from jax.experimental import pallas as pl
from jax.experimental.pallas import tpu as pltpu


def _round_up(x, m):
    return (x + m - 1) // m * m


# Conservative budgets so the same schedule fits v7x (64 MiB physical VMEM)
# as well as v5e/v6e (128 MiB).
_VMEM_BUDGET = 20 * 1024 * 1024
_VMEM_LIMIT = 28 * 1024 * 1024


# ----------------------------------------------------------------------------
# Kernels: image embedding head
#   Y = X @ W (f32 accumulate on the MXU) -> L2-normalize rows
#     -> cosine sim vs. target text embedding (lane-dense [1, N] output)
# ----------------------------------------------------------------------------
def _embed_kernel_single(x_ref, w_ref, t_ref, e_ref, sim_ref):
    """Single fat K step: no accumulator, no init/finalize branches."""
    # x_ref:[tn,K] f32  w_ref:[K,D] bf16  t_ref:[1,D] f32
    # e_ref:[tn,D] bf16 (normalized embeddings)  sim_ref:[1,tn] f32
    y = jnp.dot(x_ref[...].astype(jnp.bfloat16), w_ref[...],
                preferred_element_type=jnp.float32)
    inv_norm = lax.rsqrt(jnp.sum(y * y, axis=-1, keepdims=True) + 1e-12)
    e = y * inv_norm
    e_ref[...] = e.astype(e_ref.dtype)
    # cosine sim with the (already normalized) text embedding, bf16 operands,
    # f32 accumulation, lane-dense [1, tn] store.
    sim_ref[...] = lax.dot_general(
        t_ref[...].astype(jnp.bfloat16), e.astype(jnp.bfloat16),
        (((1,), (1,)), ((), ())), preferred_element_type=jnp.float32)


def _embed_kernel_tiled(x_ref, w_ref, t_ref, e_ref, sim_ref, acc_ref):
    """K-tiled fallback for very large K (weight tile won't fit VMEM)."""
    k = pl.program_id(1)

    @pl.when(k == 0)
    def _():
        acc_ref[...] = jnp.zeros_like(acc_ref)

    acc_ref[...] += jnp.dot(x_ref[...].astype(jnp.bfloat16), w_ref[...],
                            preferred_element_type=jnp.float32)

    @pl.when(k == pl.num_programs(1) - 1)
    def _():
        y = acc_ref[...]
        inv_norm = lax.rsqrt(jnp.sum(y * y, axis=-1, keepdims=True) + 1e-12)
        e = y * inv_norm
        e_ref[...] = e.astype(e_ref.dtype)
        sim_ref[...] = lax.dot_general(
            t_ref[...].astype(jnp.bfloat16), e.astype(jnp.bfloat16),
            (((1,), (1,)), ((), ())), preferred_element_type=jnp.float32)


# ----------------------------------------------------------------------------
# Wrapper
# ----------------------------------------------------------------------------
def prepare_projection_weight(w):
    """Hoisted weight prep (done ONCE in __init__): bf16 cast + K padding."""
    k_in, d = w.shape
    k_pad = _round_up(k_in, 128)
    w_bf = w.astype(jnp.bfloat16)
    if k_pad == k_in:
        return w_bf
    return jnp.zeros((k_pad, d), jnp.bfloat16).at[:k_in, :].set(w_bf)


def clip_image_embedding(x_nchw, w_p, target_e):
    """x_nchw: [N, ...] f32; w_p: [K_pad, D] bf16 (pre-padded, from
    prepare_projection_weight); target_e: [1, D] f32, L2-normalized.

    Returns (emb [N, D] bf16 normalized embeddings, sim [N] f32 cosine sims).
    """
    n = x_nchw.shape[0]
    k = math.prod(x_nchw.shape[1:])
    k_pad, d = w_p.shape
    assert k_pad >= k and k_pad % 128 == 0

    x_flat = x_nchw.reshape(n, k)      # row-major flatten == torch .flatten()

    # Batch tiling: one fat N tile up to 256 rows, else 256-wide tiles
    # (fewer N tiles -> W is re-streamed less often in the tiled path).
    if n <= 256:
        n_pad = max(_round_up(n, 16), 16)
        tn = n_pad
    else:
        n_pad = _round_up(n, 256)
        tn = 256

    # X stays f32 (in-kernel bf16 cast); build a padded copy only if needed.
    if n_pad != n or k_pad != k:
        x_p = jnp.zeros((n_pad, k_pad), x_flat.dtype).at[:n, :k].set(x_flat)
    else:
        x_p = x_flat

    n_tiles = n_pad // tn
    target_e = target_e.astype(jnp.float32)

    out_shapes = (
        jax.ShapeDtypeStruct((n_pad, d), jnp.bfloat16),   # normalized embeddings
        jax.ShapeDtypeStruct((1, n_pad), jnp.float32),    # cosine sims (lane axis)
    )
    # Fixed VMEM cost: double-buffered outputs + text embedding.
    out_fixed_bytes = 2 * (tn * d * 2 + tn * 4) + 2 * d * 4
    # Single-K-step footprint: double-buffered f32 X tile + bf16 W.
    single_bytes = 2 * (tn * k_pad * 4 + k_pad * d * 2) + out_fixed_bytes

    if single_bytes <= _VMEM_BUDGET:
        emb, sim = pl.pallas_call(
            _embed_kernel_single,
            out_shape=out_shapes,
            grid_spec=pltpu.PrefetchScalarGridSpec(
                num_scalar_prefetch=0,
                grid=(n_tiles,),
                in_specs=[
                    pl.BlockSpec((tn, k_pad), lambda i: (i, 0)),   # X
                    pl.BlockSpec((k_pad, d), lambda i: (0, 0)),    # W (constant)
                    pl.BlockSpec((1, d), lambda i: (0, 0)),        # text emb
                ],
                out_specs=[
                    pl.BlockSpec((tn, d), lambda i: (i, 0)),
                    pl.BlockSpec((1, tn), lambda i: (0, i)),
                ],
            ),
            compiler_params=pltpu.CompilerParams(
                dimension_semantics=("parallel",),
                vmem_limit_bytes=_VMEM_LIMIT,
            ),
        )(x_p, w_p, target_e)
    else:
        # K-tiled reduction; tk = largest 128-multiple dividing k_pad that fits
        # the budget (no wasted zero-padding DMA for ragged K).
        avail = _VMEM_BUDGET - out_fixed_bytes - tn * d * 4
        tk_max = max(128, avail // (2 * (tn * 4 + d * 2)))
        tk = 128
        cand = (tk_max // 128) * 128
        while cand >= 128:
            if k_pad % cand == 0:
                tk = cand
                break
            cand -= 128
        k_tiles = k_pad // tk
        emb, sim = pl.pallas_call(
            _embed_kernel_tiled,
            out_shape=out_shapes,
            grid_spec=pltpu.PrefetchScalarGridSpec(
                num_scalar_prefetch=0,
                grid=(n_tiles, k_tiles),                   # reduction axis last
                in_specs=[
                    pl.BlockSpec((tn, tk), lambda i, kk: (i, kk)),
                    pl.BlockSpec((tk, d), lambda i, kk: (kk, 0)),
                    pl.BlockSpec((1, d), lambda i, kk: (0, 0)),
                ],
                out_specs=[
                    pl.BlockSpec((tn, d), lambda i, kk: (i, 0)),
                    pl.BlockSpec((1, tn), lambda i, kk: (0, i)),
                ],
                scratch_shapes=[pltpu.VMEM((tn, d), jnp.float32)],
            ),
            compiler_params=pltpu.CompilerParams(
                dimension_semantics=("parallel", "arbitrary"),
                vmem_limit_bytes=_VMEM_LIMIT,
            ),
        )(x_p, w_p, target_e)

    return emb[:n], sim[0, :n]


# ----------------------------------------------------------------------------
# Last_Layer forward (JAX wrapper)
# ----------------------------------------------------------------------------
class LastLayerPallas:
    def __init__(self, key, c, h, w, d):
        k1, k2 = jax.random.split(key)
        k_in = c * h * w
        # deterministic synthetic "CLIP" projection weights (f32 master copy)
        self.w_proj = (jax.random.normal(k1, (k_in, d), jnp.float32)
                       / jnp.sqrt(jnp.float32(k_in)))
        # Hoisted per perf review: bf16 cast + K padding happens exactly once.
        self.w_p = jax.block_until_ready(prepare_projection_weight(self.w_proj))
        # target_comp_e: normalized text embedding (synthetic, deterministic)
        t = jax.random.normal(k2, (1, d), jnp.float32)
        self.target_comp_e = t / jnp.linalg.norm(t, axis=-1, keepdims=True)

    def forward(self, inputs, outputs):
        # mirrors: `for img in outputs: img_e = get_image_embedding(img.unsqueeze(0))`
        # — the per-image loop is batched into one Pallas call; the cosine
        # similarity against target_comp_e (text-criterion input) is fused in.
        emb, sim = clip_image_embedding(outputs, self.w_p, self.target_comp_e)
        return emb, sim

    def func(self, outputs):
        # nn.Sequential(nn.ReLU()): trivial elementwise op kept in the JAX
        # wrapper (XLA fuses it) instead of a standalone pallas_call.
        return jnp.maximum(outputs, 0.0)


if __name__ == "__main__":
    key = jax.random.PRNGKey(0)
    k_x, k_m = jax.random.split(key)

    N, C, H, W = 2, 4, 16, 16      # outputs: batch of generated images, NCHW
    D = 128                        # embedding dim

    outputs = jax.random.normal(k_x, (N, C, H, W), jnp.float32)
    inputs = outputs               # forward ignores `inputs`

    model = LastLayerPallas(k_m, C, H, W, D)
    emb, sim = model.forward(inputs, outputs)
    emb, sim = jax.block_until_ready((emb, sim))

    # exercise the ReLU path from Last_Layer.func
    r = jax.block_until_ready(model.func(outputs.reshape(N, C * H * W)))

    # sanity checks against a plain-JAX reference (bf16-rounded operands,
    # f32 math, matching the kernel's MXU precision; emb output is bf16)
    x_flat = outputs.reshape(N, C * H * W)
    x_bf = x_flat.astype(jnp.bfloat16).astype(jnp.float32)
    w_bf = model.w_proj.astype(jnp.bfloat16).astype(jnp.float32)
    y_ref = jnp.matmul(x_bf, w_bf, precision=lax.Precision.HIGHEST)
    emb_ref = y_ref / jnp.sqrt(jnp.sum(y_ref * y_ref, -1, keepdims=True) + 1e-12)
    sim_ref = jnp.sum(emb_ref * model.target_comp_e, -1)
    assert jnp.allclose(emb.astype(jnp.float32), emb_ref, atol=1e-2), "embedding mismatch"
    assert jnp.allclose(sim, sim_ref, atol=1e-2), "cosine sim mismatch"
    assert jnp.allclose(r, jnp.maximum(x_flat, 0.0)), "relu mismatch"

    print("KERNEL_OK")
</pallas_src>

<mosaic_0001>
module attributes {stable_mosaic.version = 11 : i64} {
  func.func @_embed_kernel_single(%arg0: i32, %arg1: memref<16x1024xf32, #tpu.memory_space<vmem>>, %arg2: memref<1024x128xbf16, #tpu.memory_space<vmem>>, %arg3: memref<1x128xf32, #tpu.memory_space<vmem>>, %arg4: memref<16x128xbf16, #tpu.memory_space<vmem>>, %arg5: memref<1x16xf32, #tpu.memory_space<vmem>>) attributes {dimension_semantics = [#tpu.dimension_semantics<parallel>], iteration_bounds = array<i64: 1>, scalar_prefetch = 0 : i64, scratch_operands = 0 : i64, tpu.core_type = #tpu.core_type<tc>, window_params = [{transform_indices = @transform_0, window_bounds = array<i64: 16, 1024>}, {pipeline_mode = #tpu.pipeline_mode<synchronous>, transform_indices = @transform_1, window_bounds = array<i64: 1024, 128>}, {pipeline_mode = #tpu.pipeline_mode<synchronous>, transform_indices = @transform_2, window_bounds = array<i64: 1, 128>}, {transform_indices = @transform_3, window_bounds = array<i64: 16, 128>}, {transform_indices = @transform_4, window_bounds = array<i64: 1, 16>}]} {
    %c0 = arith.constant 0 : index
    %c0_0 = arith.constant 0 : index
    %0 = vector.load %arg1[%c0, %c0_0] : memref<16x1024xf32, #tpu.memory_space<vmem>>, vector<16x1024xf32>
    %1 = arith.truncf %0 : vector<16x1024xf32> to vector<16x1024xbf16>
    %c0_1 = arith.constant 0 : index
    %c0_2 = arith.constant 0 : index
    %2 = vector.load %arg2[%c0_1, %c0_2] : memref<1024x128xbf16, #tpu.memory_space<vmem>>, vector<1024x128xbf16>
    %cst = arith.constant dense<0.000000e+00> : vector<16x128xf32>
    %3 = tpu.matmul %1, %2, %cst {dimension_numbers = #tpu.dot_dimension_numbers<[1], [0], [0], [1], [0, 0, 1, 1], [], []>} : vector<16x1024xbf16>, vector<1024x128xbf16>, vector<16x128xf32> -> vector<16x128xf32>
    %4 = arith.mulf %3, %3 : vector<16x128xf32>
    %cst_3 = arith.constant dense<0.000000e+00> : vector<16xf32>
    %5 = vector.multi_reduction <add>, %4, %cst_3 [1] : vector<16x128xf32> to vector<16xf32>
    %6 = vector.shape_cast %5 : vector<16xf32> to vector<16x1xf32>
    %cst_4 = arith.constant 9.99999996E-13 : f32
    %7 = vector.broadcast %cst_4 : f32 to vector<16x1xf32>
    %8 = arith.addf %6, %7 : vector<16x1xf32>
    %9 = math.rsqrt %8 : vector<16x1xf32>
    %10 = vector.broadcast %9 : vector<16x1xf32> to vector<16x128xf32>
    %11 = arith.mulf %3, %10 : vector<16x128xf32>
    %12 = arith.truncf %11 : vector<16x128xf32> to vector<16x128xbf16>
    %c0_5 = arith.constant 0 : index
    %c0_6 = arith.constant 0 : index
    %13 = vector.load %arg4[%c0_5, %c0_6] : memref<16x128xbf16, #tpu.memory_space<vmem>>, vector<16x128xbf16>
    tpu.vector_store %arg4[%c0_5, %c0_6], %12 {strides = array<i32>} : memref<16x128xbf16, #tpu.memory_space<vmem>>, vector<16x128xbf16>,
    %c0_7 = arith.constant 0 : index
    %c0_8 = arith.constant 0 : index
    %14 = vector.load %arg3[%c0_7, %c0_8] : memref<1x128xf32, #tpu.memory_space<vmem>>, vector<1x128xf32>
    %15 = arith.truncf %14 : vector<1x128xf32> to vector<1x128xbf16>
    %16 = arith.truncf %11 : vector<16x128xf32> to vector<16x128xbf16>
    %cst_9 = arith.constant dense<0.000000e+00> : vector<1x16xf32>
    %17 = tpu.matmul %15, %16, %cst_9 {dimension_numbers = #tpu.dot_dimension_numbers<[1], [1], [0], [0], [0, 0, 1, 0], [], []>} : vector<1x128xbf16>, vector<16x128xbf16>, vector<1x16xf32> -> vector<1x16xf32>
    %c0_10 = arith.constant 0 : index
    %c0_11 = arith.constant 0 : index
    %18 = vector.load %arg5[%c0_10, %c0_11] : memref<1x16xf32, #tpu.memory_space<vmem>>, vector<1x16xf32>
    tpu.vector_store %arg5[%c0_10, %c0_11], %17 {strides = array<i32>} : memref<1x16xf32, #tpu.memory_space<vmem>>, vector<1x16xf32>,
    return
  }
  func.func @transform_0(%arg0: i32) -> (i32, i32) {
    %c0_i32 = arith.constant 0 : i32
    %c0_i32_0 = arith.constant 0 : i32
    return %arg0, %c0_i32 : i32, i32
  }
  func.func @transform_1(%arg0: i32) -> (i32, i32) {
    %c0_i32 = arith.constant 0 : i32
    %c0_i32_0 = arith.constant 0 : i32
    %c0_i32_1 = arith.constant 0 : i32
    return %c0_i32, %c0_i32_0 : i32, i32
  }
  func.func @transform_2(%arg0: i32) -> (i32, i32) {
    %c0_i32 = arith.constant 0 : i32
    %c0_i32_0 = arith.constant 0 : i32
    %c0_i32_1 = arith.constant 0 : i32
    return %c0_i32, %c0_i32_0 : i32, i32
  }
  func.func @transform_3(%arg0: i32) -> (i32, i32) {
    %c0_i32 = arith.constant 0 : i32
    %c0_i32_0 = arith.constant 0 : i32
    return %arg0, %c0_i32 : i32, i32
  }
  func.func @transform_4(%arg0: i32) -> (i32, i32) {
    %c0_i32 = arith.constant 0 : i32
    %c0_i32_0 = arith.constant 0 : i32
    return %c0_i32, %arg0 : i32, i32
  }
}

</mosaic_0001>

<llo_original>
// kernel: tpu_custom_call.1
$region0: #{tpu_custom_call.1}
  #allocation0 [shape = 'u32[]', space=smem, size = 0x4, offset = 0x4, fixed_abs, tag = 'smem constant byte address 0x4 - core index']
  #allocation1 [shape = 'u32[144,128]{1,0:T(1,128)}', space=vmem, size = 0x12000, scoped, tag = 'internal scratch']
  %s0 = inlined_call_operand.hbm [shape: f32[16,1024], index: 0, kind: input, shape index: {}]
  %s1 = inlined_call_operand.hbm [shape: bf16[1024,128], index: 1, kind: input, shape index: {}]
  %s2 = inlined_call_operand.vmem [shape: f32[1,128], index: 2, kind: input, shape index: {}]
  %s3 = inlined_call_operand.hbm [shape: bf16[16,128], index: 3, kind: output, shape index: {0}]
  %s4 = inlined_call_operand.hbm [shape: f32[1,16], index: 4, kind: output, shape index: {1}]
  %5 = xla_tuple %s3, %s4
  %s6 = sld [smem:[#allocation0]]
  $region38: #{tpu_custom_call.1} parent=0
    _
  %s8 = ssub.s32 1, %s6
  %s9 = scalar_select 0, %s8, %s6
  $region1: #{tpu_custom_call.1} parent=0
    #allocation2 [shape = 'u8[65536]{0}', space=vmem, size = 0x10000, scoped, tag = 'input window, operand 0, single buffered']
    #allocation3 [shape = 's32[1]{0}', space=sflag, size = 0x4, scoped, tag = 'scoped memory for tpu_custom_call.1']
    #allocation4 [shape = 's32[1]{0}', space=sflag, size = 0x4, scoped, tag = 'scoped memory for tpu_custom_call.1']
    #allocation5 [shape = 'u8[262144]{0}', space=vmem, size = 0x40000, scoped, tag = 'input window, operand 1, single buffered']
    #allocation6 [shape = 's32[1]{0}', space=sflag, size = 0x4, scoped, tag = 'scoped memory for tpu_custom_call.1']
    #allocation7 [shape = 'u8[4096]{0}', space=vmem, size = 0x1000, scoped, tag = 'output window, operand 0, single buffered']
    #allocation8 [shape = 'u8[512]{0}', space=vmem, size = 0x400, scoped, tag = 'output window, operand 1, single buffered']
    #allocation9 [shape = 's32[1]{0}', space=sflag, size = 0x4, scoped, tag = 'scoped memory for tpu_custom_call.1']
    %10 = vsyncpa [#allocation3], 0
    %11 = vsyncpa [#allocation6], 0
    %12 = vsyncpa [#allocation4], 0
    %13 = vsyncpa [#allocation9], 0
    // Predicated region
    $region2: #{tpu_custom_call.1} parent=1 // pred_check
      _
    $region3: #{tpu_custom_call.1} parent=1 // pred_check_branch
      %15 = sbr.rel (0) target = $region5
    $region4: #{tpu_custom_call.1} parent=1 // pred_region
      %s17 = ssub.s32 2048, 2048
      %18 = vsyncadd [#allocation3], %s17
      %s19 = sshll.u32 [#allocation2], 4
      %s20 = int_to_ptr.vmem [resolvable:$true] %s19
      %25 = dma.hbm_to_vmem [thread:$0]  %s0, 2048, %s20, [#allocation3], 1024, 1024, 64
    $region5: #{tpu_custom_call.1} parent=1 // pred_fallthru
      _
    // Predicated region
    $region6: #{tpu_custom_call.1} parent=1 // pred_check
      _
    $region7: #{tpu_custom_call.1} parent=1 // pred_check_branch
      %27 = sbr.rel (0) target = $region9
    $region8: #{tpu_custom_call.1} parent=1 // pred_region
      %s29 = ssub.s32 8192, 8192
      %30 = vsyncadd [#allocation6], %s29
      %s31 = sshll.u32 [#allocation5], 4
      %s32 = int_to_ptr.vmem [resolvable:$true] %s31
      %37 = dma.hbm_to_vmem [thread:$0]  %s1, 8192, %s32, [#allocation6], 64, 64, 4
    $region9: #{tpu_custom_call.1} parent=1 // pred_fallthru
      _
    // Predicated region
    $region10: #{tpu_custom_call.1} parent=1 // pred_check
      _
    $region11: #{tpu_custom_call.1} parent=1 // pred_check_branch
      %39 = sbr.rel (0) target = $region13
    $region12: #{tpu_custom_call.1} parent=1 // pred_region
      _
    $region13: #{tpu_custom_call.1} parent=1 // pred_fallthru
      _
    // Predicated region
    $region14: #{tpu_custom_call.1} parent=1 // pred_check
      _
    $region15: #{tpu_custom_call.1} parent=1 // pred_check_branch
      %41 = sbr.rel (0) target = $region17
    $region16: #{tpu_custom_call.1} parent=1 // pred_region
      %42 = dma.done [#allocation3], 2048
    $region17: #{tpu_custom_call.1} parent=1 // pred_fallthru
      _
    // Predicated region
    $region18: #{tpu_custom_call.1} parent=1 // pred_check
      _
    $region19: #{tpu_custom_call.1} parent=1 // pred_check_branch
      %44 = sbr.rel (0) target = $region21
    $region20: #{tpu_custom_call.1} parent=1 // pred_region
      %45 = dma.done [#allocation6], 8192
    $region21: #{tpu_custom_call.1} parent=1 // pred_fallthru
      _
    %v47 = vld [vmem:[#allocation2] sm:$0xff]
    %v48 = vld [vmem:[#allocation2 + $0x8] sm:$0xff]
    %v49 = vld [vmem:[#allocation2 + $0x10] sm:$0xff]
    %v50 = vld [vmem:[#allocation2 + $0x18] sm:$0xff]
    %v51 = vld [vmem:[#allocation2 + $0x20] sm:$0xff]
    %v52 = vld [vmem:[#allocation2 + $0x28] sm:$0xff]
    %v53 = vld [vmem:[#allocation2 + $0x30] sm:$0xff]
    %v54 = vld [vmem:[#allocation2 + $0x38] sm:$0xff]
    %v55 = vld [vmem:[#allocation2 + $0x40] sm:$0xff]
    %v56 = vld [vmem:[#allocation2 + $0x48] sm:$0xff]
    %v57 = vld [vmem:[#allocation2 + $0x50] sm:$0xff]
    %v58 = vld [vmem:[#allocation2 + $0x58] sm:$0xff]
    %v59 = vld [vmem:[#allocation2 + $0x60] sm:$0xff]
    %v60 = vld [vmem:[#allocation2 + $0x68] sm:$0xff]
    %v61 = vld [vmem:[#allocation2 + $0x70] sm:$0xff]
    %v62 = vld [vmem:[#allocation2 + $0x78] sm:$0xff]
    %v63 = vpack.c.bf16 %v55, %v47
    %v64 = vpack.c.bf16 %v56, %v48
    %v65 = vpack.c.bf16 %v57, %v49
    %v66 = vpack.c.bf16 %v58, %v50
    %v67 = vpack.c.bf16 %v59, %v51
    %v68 = vpack.c.bf16 %v60, %v52
    %v69 = vpack.c.bf16 %v61, %v53
    %v70 = vpack.c.bf16 %v62, %v54
    %v71 = vld [vmem:[#allocation5] sm:$0xf]
    %v72 = vld [vmem:[#allocation5 + $0x4] sm:$0xf]
    %v73 = vld [vmem:[#allocation5 + $0x8] sm:$0xf]
    %v74 = vld [vmem:[#allocation5 + $0xc] sm:$0xf]
    %v75 = vld [vmem:[#allocation5 + $0x10] sm:$0xf]
    %v76 = vld [vmem:[#allocation5 + $0x14] sm:$0xf]
    %v77 = vld [vmem:[#allocation5 + $0x18] sm:$0xf]
    %v78 = vld [vmem:[#allocation5 + $0x1c] sm:$0xf]
    %v79 = vld [vmem:[#allocation5 + $0x20] sm:$0xf]
    %v80 = vld [vmem:[#allocation5 + $0x24] sm:$0xf]
    %v81 = vld [vmem:[#allocation5 + $0x28] sm:$0xf]
    %v82 = vld [vmem:[#allocation5 + $0x2c] sm:$0xf]
    %v83 = vld [vmem:[#allocation5 + $0x30] sm:$0xf]
    %v84 = vld [vmem:[#allocation5 + $0x34] sm:$0xf]
    %v85 = vld [vmem:[#allocation5 + $0x38] sm:$0xf]
    %v86 = vld [vmem:[#allocation5 + $0x3c] sm:$0xf]
    %v87 = vld [vmem:[#allocation5 + $0x40] sm:$0xf]
    %v88 = vld [vmem:[#allocation5 + $0x44] sm:$0xf]
    %v89 = vld [vmem:[#allocation5 + $0x48] sm:$0xf]
    %v90 = vld [vmem:[#allocation5 + $0x4c] sm:$0xf]
    %v91 = vld [vmem:[#allocation5 + $0x50] sm:$0xf]
    %v92 = vld [vmem:[#allocation5 + $0x54] sm:$0xf]
    %v93 = vld [vmem:[#allocation5 + $0x58] sm:$0xf]
    %v94 = vld [vmem:[#allocation5 + $0x5c] sm:$0xf]
    %v95 = vld [vmem:[#allocation5 + $0x60] sm:$0xf]
    %v96 = vld [vmem:[#allocation5 + $0x64] sm:$0xf]
    %v97 = vld [vmem:[#allocation5 + $0x68] sm:$0xf]
    %v98 = vld [vmem:[#allocation5 + $0x6c] sm:$0xf]
    %v99 = vld [vmem:[#allocation5 + $0x70] sm:$0xf]
    %v100 = vld [vmem:[#allocation5 + $0x74] sm:$0xf]
    %v101 = vld [vmem:[#allocation5 + $0x78] sm:$0xf]
    %v102 = vld [vmem:[#allocation5 + $0x7c] sm:$0xf]
    %v103 = vld [vmem:[#allocation5 + $0x80] sm:$0xf]
    %v104 = vld [vmem:[#allocation5 + $0x84] sm:$0xf]
    %v105 = vld [vmem:[#allocation5 + $0x88] sm:$0xf]
    %v106 = vld [vmem:[#allocation5 + $0x8c] sm:$0xf]
    %v107 = vld [vmem:[#allocation5 + $0x90] sm:$0xf]
    %v108 = vld [vmem:[#allocation5 + $0x94] sm:$0xf]
    %v109 = vld [vmem:[#allocation5 + $0x98] sm:$0xf]
    %v110 = vld [vmem:[#allocation5 + $0x9c] sm:$0xf]
    %v111 = vld [vmem:[#allocation5 + $0xa0] sm:$0xf]
    %v112 = vld [vmem:[#allocation5 + $0xa4] sm:$0xf]
    %v113 = vld [vmem:[#allocation5 + $0xa8] sm:$0xf]
    %v114 = vld [vmem:[#allocation5 + $0xac] sm:$0xf]
    %v115 = vld [vmem:[#allocation5 + $0xb0] sm:$0xf]
    %v116 = vld [vmem:[#allocation5 + $0xb4] sm:$0xf]
    %v117 = vld [vmem:[#allocation5 + $0xb8] sm:$0xf]
    %v118 = vld [vmem:[#allocation5 + $0xbc] sm:$0xf]
    %v119 = vld [vmem:[#allocation5 + $0xc0] sm:$0xf]
    %v120 = vld [vmem:[#allocation5 + $0xc4] sm:$0xf]
    %v121 = vld [vmem:[#allocation5 + $0xc8] sm:$0xf]
    %v122 = vld [vmem:[#allocation5 + $0xcc] sm:$0xf]
    %v123 = vld [vmem:[#allocation5 + $0xd0] sm:$0xf]
    %v124 = vld [vmem:[#allocation5 + $0xd4] sm:$0xf]
    %v125 = vld [vmem:[#allocation5 + $0xd8] sm:$0xf]
    %v126 = vld [vmem:[#allocation5 + $0xdc] sm:$0xf]
    %v127 = vld [vmem:[#allocation5 + $0xe0] sm:$0xf]
    %v128 = vld [vmem:[#allocation5 + $0xe4] sm:$0xf]
    %v129 = vld [vmem:[#allocation5 + $0xe8] sm:$0xf]
    %v130 = vld [vmem:[#allocation5 + $0xec] sm:$0xf]
    %v131 = vld [vmem:[#allocation5 + $0xf0] sm:$0xf]
    %v132 = vld [vmem:[#allocation5 + $0xf4] sm:$0xf]
    %v133 = vld [vmem:[#allocation5 + $0xf8] sm:$0xf]
    %v134 = vld [vmem:[#allocation5 + $0xfc] sm:$0xf]
    %v135 = vld [vmem:[#allocation5 + $0x100] sm:$0xf]
    %v136 = vld [vmem:[#allocation5 + $0x104] sm:$0xf]
    %v137 = vld [vmem:[#allocation5 + $0x108] sm:$0xf]
    %v138 = vld [vmem:[#allocation5 + $0x10c] sm:$0xf]
    %v139 = vld [vmem:[#allocation5 + $0x110] sm:$0xf]
    %v140 = vld [vmem:[#allocation5 + $0x114] sm:$0xf]
    %v141 = vld [vmem:[#allocation5 + $0x118] sm:$0xf]
    %v142 = vld [vmem:[#allocation5 + $0x11c] sm:$0xf]
    %v143 = vld [vmem:[#allocation5 + $0x120] sm:$0xf]
    %v144 = vld [vmem:[#allocation5 + $0x124] sm:$0xf]
    %v145 = vld [vmem:[#allocation5 + $0x128] sm:$0xf]
    %v146 = vld [vmem:[#allocation5 + $0x12c] sm:$0xf]
    %v147 = vld [vmem:[#allocation5 + $0x130] sm:$0xf]
    %v148 = vld [vmem:[#allocation5 + $0x134] sm:$0xf]
    %v149 = vld [vmem:[#allocation5 + $0x138] sm:$0xf]
    %v150 = vld [vmem:[#allocation5 + $0x13c] sm:$0xf]
    %v151 = vld [vmem:[#allocation5 + $0x140] sm:$0xf]
    %v152 = vld [vmem:[#allocation5 + $0x144] sm:$0xf]
    %v153 = vld [vmem:[#allocation5 + $0x148] sm:$0xf]
    %v154 = vld [vmem:[#allocation5 + $0x14c] sm:$0xf]
    %v155 = vld [vmem:[#allocation5 + $0x150] sm:$0xf]
    %v156 = vld [vmem:[#allocation5 + $0x154] sm:$0xf]
    %v157 = vld [vmem:[#allocation5 + $0x158] sm:$0xf]
    %v158 = vld [vmem:[#allocation5 + $0x15c] sm:$0xf]
    %v159 = vld [vmem:[#allocation5 + $0x160] sm:$0xf]
    %v160 = vld [vmem:[#allocation5 + $0x164] sm:$0xf]
    %v161 = vld [vmem:[#allocation5 + $0x168] sm:$0xf]
    %v162 = vld [vmem:[#allocation5 + $0x16c] sm:$0xf]
    %v163 = vld [vmem:[#allocation5 + $0x170] sm:$0xf]
    %v164 = vld [vmem:[#allocation5 + $0x174] sm:$0xf]
    %v165 = vld [vmem:[#allocation5 + $0x178] sm:$0xf]
    %v166 = vld [vmem:[#allocation5 + $0x17c] sm:$0xf]
    %v167 = vld [vmem:[#allocation5 + $0x180] sm:$0xf]
    %v168 = vld [vmem:[#allocation5 + $0x184] sm:$0xf]
    %v169 = vld [vmem:[#allocation5 + $0x188] sm:$0xf]
    %v170 = vld [vmem:[#allocation5 + $0x18c] sm:$0xf]
    %v171 = vld [vmem:[#allocation5 + $0x190] sm:$0xf]
    %v172 = vld [vmem:[#allocation5 + $0x194] sm:$0xf]
    %v173 = vld [vmem:[#allocation5 + $0x198] sm:$0xf]
    %v174 = vld [vmem:[#allocation5 + $0x19c] sm:$0xf]
    %v175 = vld [vmem:[#allocation5 + $0x1a0] sm:$0xf]
    %v176 = vld [vmem:[#allocation5 + $0x1a4] sm:$0xf]
    %v177 = vld [vmem:[#allocation5 + $0x1a8] sm:$0xf]
    %v178 = vld [vmem:[#allocation5 + $0x1ac] sm:$0xf]
    %v179 = vld [vmem:[#allocation5 + $0x1b0] sm:$0xf]
    %v180 = vld [vmem:[#allocation5 + $0x1b4] sm:$0xf]
    %v181 = vld [vmem:[#allocation5 + $0x1b8] sm:$0xf]
    %v182 = vld [vmem:[#allocation5 + $0x1bc] sm:$0xf]
    %v183 = vld [vmem:[#allocation5 + $0x1c0] sm:$0xf]
    %v184 = vld [vmem:[#allocation5 + $0x1c4] sm:$0xf]
    %v185 = vld [vmem:[#allocation5 + $0x1c8] sm:$0xf]
    %v186 = vld [vmem:[#allocation5 + $0x1cc] sm:$0xf]
    %v187 = vld [vmem:[#allocation5 + $0x1d0] sm:$0xf]
    %v188 = vld [vmem:[#allocation5 + $0x1d4] sm:$0xf]
    %v189 = vld [vmem:[#allocation5 + $0x1d8] sm:$0xf]
    %v190 = vld [vmem:[#allocation5 + $0x1dc] sm:$0xf]
    %v191 = vld [vmem:[#allocation5 + $0x1e0] sm:$0xf]
    %v192 = vld [vmem:[#allocation5 + $0x1e4] sm:$0xf]
    %v193 = vld [vmem:[#allocation5 + $0x1e8] sm:$0xf]
    %v194 = vld [vmem:[#allocation5 + $0x1ec] sm:$0xf]
    %v195 = vld [vmem:[#allocation5 + $0x1f0] sm:$0xf]
    %v196 = vld [vmem:[#allocation5 + $0x1f4] sm:$0xf]
    %v197 = vld [vmem:[#allocation5 + $0x1f8] sm:$0xf]
    %v198 = vld [vmem:[#allocation5 + $0x1fc] sm:$0xf]
    %v327 = vunpack.c.l.b16 %v71
    %v328 = vunpack.c.l.b16 %v72
    %v329 = vunpack.c.l.b16 %v73
    %v330 = vunpack.c.l.b16 %v74
    %v331 = vunpack.c.l.b16 %v75
    %v332 = vunpack.c.l.b16 %v76
    %v333 = vunpack.c.l.b16 %v77
    %v334 = vunpack.c.l.b16 %v78
    %v335 = vunpack.c.l.b16 %v79
    %v336 = vunpack.c.l.b16 %v80
    %v337 = vunpack.c.l.b16 %v81
    %v338 = vunpack.c.l.b16 %v82
    %v339 = vunpack.c.l.b16 %v83
    %v340 = vunpack.c.l.b16 %v84
    %v341 = vunpack.c.l.b16 %v85
    %v342 = vunpack.c.l.b16 %v86
    %v343 = vunpack.c.l.b16 %v87
    %v344 = vunpack.c.l.b16 %v88
    %v345 = vunpack.c.l.b16 %v89
    %v346 = vunpack.c.l.b16 %v90
    %v347 = vunpack.c.l.b16 %v91
    %v348 = vunpack.c.l.b16 %v92
    %v349 = vunpack.c.l.b16 %v93
    %v350 = vunpack.c.l.b16 %v94
    %v351 = vunpack.c.l.b16 %v95
    %v352 = vunpack.c.l.b16 %v96
    %v353 = vunpack.c.l.b16 %v97
    %v354 = vunpack.c.l.b16 %v98
    %v355 = vunpack.c.l.b16 %v99
    %v356 = vunpack.c.l.b16 %v100
    %v357 = vunpack.c.l.b16 %v101
    %v358 = vunpack.c.l.b16 %v102
    %v359 = vunpack.c.l.b16 %v103
    %v360 = vunpack.c.l.b16 %v104
    %v361 = vunpack.c.l.b16 %v105
    %v362 = vunpack.c.l.b16 %v106
    %v363 = vunpack.c.l.b16 %v107
    %v364 = vunpack.c.l.b16 %v108
    %v365 = vunpack.c.l.b16 %v109
    %v366 = vunpack.c.l.b16 %v110
    %v367 = vunpack.c.l.b16 %v111
    %v368 = vunpack.c.l.b16 %v112
    %v369 = vunpack.c.l.b16 %v113
    %v370 = vunpack.c.l.b16 %v114
    %v371 = vunpack.c.l.b16 %v115
    %v372 = vunpack.c.l.b16 %v116
    %v373 = vunpack.c.l.b16 %v117
    %v374 = vunpack.c.l.b16 %v118
    %v375 = vunpack.c.l.b16 %v119
    %v376 = vunpack.c.l.b16 %v120
    %v377 = vunpack.c.l.b16 %v121
    %v378 = vunpack.c.l.b16 %v122
    %v379 = vunpack.c.l.b16 %v123
    %v380 = vunpack.c.l.b16 %v124
    %v381 = vunpack.c.l.b16 %v125
    %v382 = vunpack.c.l.b16 %v126
    %v383 = vunpack.c.l.b16 %v127
    %v384 = vunpack.c.l.b16 %v128
    %v385 = vunpack.c.l.b16 %v129
    %v386 = vunpack.c.l.b16 %v130
    %v387 = vunpack.c.l.b16 %v131
    %v388 = vunpack.c.l.b16 %v132
    %v389 = vunpack.c.l.b16 %v133
    %v390 = vunpack.c.l.b16 %v134
    %v391 = vunpack.c.l.b16 %v135
    %v392 = vunpack.c.l.b16 %v136
    %v393 = vunpack.c.l.b16 %v137
    %v394 = vunpack.c.l.b16 %v138
    %v395 = vunpack.c.l.b16 %v139
    %v396 = vunpack.c.l.b16 %v140
    %v397 = vunpack.c.l.b16 %v141
    %v398 = vunpack.c.l.b16 %v142
    %v399 = vunpack.c.l.b16 %v143
    %v400 = vunpack.c.l.b16 %v144
    %v401 = vunpack.c.l.b16 %v145
    %v402 = vunpack.c.l.b16 %v146
    %v403 = vunpack.c.l.b16 %v147
    %v404 = vunpack.c.l.b16 %v148
    %v405 = vunpack.c.l.b16 %v149
    %v406 = vunpack.c.l.b16 %v150
    %v407 = vunpack.c.l.b16 %v151
    %v408 = vunpack.c.l.b16 %v152
    %v409 = vunpack.c.l.b16 %v153
    %v410 = vunpack.c.l.b16 %v154
    %v411 = vunpack.c.l.b16 %v155
    %v412 = vunpack.c.l.b16 %v156
    %v413 = vunpack.c.l.b16 %v157
    %v414 = vunpack.c.l.b16 %v158
    %v415 = vunpack.c.l.b16 %v159
    %v416 = vunpack.c.l.b16 %v160
    %v417 = vunpack.c.l.b16 %v161
    %v418 = vunpack.c.l.b16 %v162
    %v419 = vunpack.c.l.b16 %v163
    %v420 = vunpack.c.l.b16 %v164
    %v421 = vunpack.c.l.b16 %v165
    %v422 = vunpack.c.l.b16 %v166
    %v423 = vunpack.c.l.b16 %v167
    %v424 = vunpack.c.l.b16 %v168
    %v425 = vunpack.c.l.b16 %v169
    %v426 = vunpack.c.l.b16 %v170
    %v427 = vunpack.c.l.b16 %v171
    %v428 = vunpack.c.l.b16 %v172
    %v429 = vunpack.c.l.b16 %v173
    %v430 = vunpack.c.l.b16 %v174
    %v431 = vunpack.c.l.b16 %v175
    %v432 = vunpack.c.l.b16 %v176
    %v433 = vunpack.c.l.b16 %v177
    %v434 = vunpack.c.l.b16 %v178
    %v435 = vunpack.c.l.b16 %v179
    %v436 = vunpack.c.l.b16 %v180
    %v437 = vunpack.c.l.b16 %v181
    %v438 = vunpack.c.l.b16 %v182
    %v439 = vunpack.c.l.b16 %v183
    %v440 = vunpack.c.l.b16 %v184
    %v441 = vunpack.c.l.b16 %v185
    %v442 = vunpack.c.l.b16 %v186
    %v443 = vunpack.c.l.b16 %v187
    %v444 = vunpack.c.l.b16 %v188
    %v445 = vunpack.c.l.b16 %v189
    %v446 = vunpack.c.l.b16 %v190
    %v447 = vunpack.c.l.b16 %v191
    %v448 = vunpack.c.l.b16 %v192
    %v449 = vunpack.c.l.b16 %v193
    %v450 = vunpack.c.l.b16 %v194
    %v451 = vunpack.c.l.b16 %v195
    %v452 = vunpack.c.l.b16 %v196
    %v453 = vunpack.c.l.b16 %v197
    %v454 = vunpack.c.l.b16 %v198
    %v455 = vpack.c.b16 %v328, %v327
    %v456 = vpack.c.b16 %v330, %v329
    %v457 = vpack.c.b16 %v332, %v331
    %v458 = vpack.c.b16 %v334, %v333
    %v459 = vpack.c.b16 %v336, %v335
    %v460 = vpack.c.b16 %v338, %v337
    %v461 = vpack.c.b16 %v340, %v339
    %v462 = vpack.c.b16 %v342, %v341
    %v463 = vpack.c.b16 %v344, %v343
    %v464 = vpack.c.b16 %v346, %v345
    %v465 = vpack.c.b16 %v348, %v347
    %v466 = vpack.c.b16 %v350, %v349
    %v467 = vpack.c.b16 %v352, %v351
    %v468 = vpack.c.b16 %v354, %v353
    %v469 = vpack.c.b16 %v356, %v355
    %v470 = vpack.c.b16 %v358, %v357
    %v471 = vpack.c.b16 %v360, %v359
    %v472 = vpack.c.b16 %v362, %v361
    %v473 = vpack.c.b16 %v364, %v363
    %v474 = vpack.c.b16 %v366, %v365
    %v475 = vpack.c.b16 %v368, %v367
    %v476 = vpack.c.b16 %v370, %v369
    %v477 = vpack.c.b16 %v372, %v371
    %v478 = vpack.c.b16 %v374, %v373
    %v479 = vpack.c.b16 %v376, %v375
    %v480 = vpack.c.b16 %v378, %v377
    %v481 = vpack.c.b16 %v380, %v379
    %v482 = vpack.c.b16 %v382, %v381
    %v483 = vpack.c.b16 %v384, %v383
    %v484 = vpack.c.b16 %v386, %v385
    %v485 = vpack.c.b16 %v388, %v387
    %v486 = vpack.c.b16 %v390, %v389
    %v487 = vpack.c.b16 %v392, %v391
    %v488 = vpack.c.b16 %v394, %v393
    %v489 = vpack.c.b16 %v396, %v395
    %v490 = vpack.c.b16 %v398, %v397
    %v491 = vpack.c.b16 %v400, %v399
    %v492 = vpack.c.b16 %v402, %v401
    %v493 = vpack.c.b16 %v404, %v403
    %v494 = vpack.c.b16 %v406, %v405
    %v495 = vpack.c.b16 %v408, %v407
    %v496 = vpack.c.b16 %v410, %v409
    %v497 = vpack.c.b16 %v412, %v411
    %v498 = vpack.c.b16 %v414, %v413
    %v499 = vpack.c.b16 %v416, %v415
    %v500 = vpack.c.b16 %v418, %v417
    %v501 = vpack.c.b16 %v420, %v419
    %v502 = vpack.c.b16 %v422, %v421
    %v503 = vpack.c.b16 %v424, %v423
    %v504 = vpack.c.b16 %v426, %v425
    %v505 = vpack.c.b16 %v428, %v427
    %v506 = vpack.c.b16 %v430, %v429
    %v507 = vpack.c.b16 %v432, %v431
    %v508 = vpack.c.b16 %v434, %v433
    %v509 = vpack.c.b16 %v436, %v435
    %v510 = vpack.c.b16 %v438, %v437
    %v511 = vpack.c.b16 %v440, %v439
    %v512 = vpack.c.b16 %v442, %v441
    %v513 = vpack.c.b16 %v444, %v443
    %v514 = vpack.c.b16 %v446, %v445
    %v515 = vpack.c.b16 %v448, %v447
    %v516 = vpack.c.b16 %v450, %v449
    %v517 = vpack.c.b16 %v452, %v451
    %v518 = vpack.c.b16 %v454, %v453
    %583 = vmatprep.subr.bf16.mxu0 0
    %584 = vmatpush1.bf16.msra.mxu0 %v462
    %585 = vmatprep.subr.bf16.mxu0 0
    %586 = vmatpush1.bf16.msra.mxu0 %v461
    %587 = vmatprep.subr.bf16.mxu0 0
    %588 = vmatpush1.bf16.msra.mxu0 %v460
    %589 = vmatprep.subr.bf16.mxu0 0
    %590 = vmatpush1.bf16.msra.mxu0 %v459
    %591 = vmatprep.subr.bf16.mxu0 0
    %592 = vmatpush1.bf16.msra.mxu0 %v458
    %593 = vmatprep.subr.bf16.mxu0 0
    %594 = vmatpush1.bf16.msra.mxu0 %v457
    %595 = vmatprep.subr.bf16.mxu0 0
    %596 = vmatpush1.bf16.msra.mxu0 %v456
    %597 = vmatprep.subr.bf16.mxu0 0
    %598 = vmatpush1.bf16.msra.mxu0 %v455
    %599 = vmatprep.subr.bf16.mxu0 0
    %600 = vmatpush2.bf16.msra.mxu0 %v470
    %601 = vmatprep.subr.bf16.mxu0 0
    %602 = vmatpush2.bf16.msra.mxu0 %v469
    %603 = vmatprep.subr.bf16.mxu0 0
    %604 = vmatpush2.bf16.msra.mxu0 %v468
    %605 = vmatprep.subr.bf16.mxu0 0
    %606 = vmatpush2.bf16.msra.mxu0 %v467
    %607 = vmatprep.subr.bf16.mxu0 0
    %608 = vmatpush2.bf16.msra.mxu0 %v466
    %609 = vmatprep.subr.bf16.mxu0 0
    %610 = vmatpush2.bf16.msra.mxu0 %v465
    %611 = vmatprep.subr.bf16.mxu0 0
    %612 = vmatpush2.bf16.msra.mxu0 %v464
    %613 = vmatprep.subr.bf16.mxu0 0
    %614 = vmatpush2.bf16.msra.mxu0 %v463
    %615 = vmatprep.mubr.bf16.mxu0 %v64
    %616 = vmatmul.mubr.bf16.gmra.mxu0 %v63
    %v617 = vpop.f32.mrf.mxu0
    %v618 = vadd.f32 0.0, %v617
    %v619 = vpop.f32.mrf.mxu0
    %v620 = vpop.f32.mrf.mxu0
    %v621 = vadd.f32 0.0, %v620
    %v622 = vpop.f32.mrf.mxu0
    %623 = vdwg.mxu0
    %624 = vmatprep.subr.bf16.mxu0 0
    %625 = vmatpush1.bf16.msra.mxu0 %v478
    %626 = vmatprep.subr.bf16.mxu0 0
    %627 = vmatpush1.bf16.msra.mxu0 %v477
    %628 = vmatprep.subr.bf16.mxu0 0
    %629 = vmatpush1.bf16.msra.mxu0 %v476
    %630 = vmatprep.subr.bf16.mxu0 0
    %631 = vmatpush1.bf16.msra.mxu0 %v475
    %632 = vmatprep.subr.bf16.mxu0 0
    %633 = vmatpush1.bf16.msra.mxu0 %v474
    %634 = vmatprep.subr.bf16.mxu0 0
    %635 = vmatpush1.bf16.msra.mxu0 %v473
    %636 = vmatprep.subr.bf16.mxu0 0
    %637 = vmatpush1.bf16.msra.mxu0 %v472
    %638 = vmatprep.subr.bf16.mxu0 0
    %639 = vmatpush1.bf16.msra.mxu0 %v471
    %640 = vmatprep.subr.bf16.mxu0 0
    %641 = vmatpush2.bf16.msra.mxu0 %v486
    %642 = vmatprep.subr.bf16.mxu0 0
    %643 = vmatpush2.bf16.msra.mxu0 %v485
    %644 = vmatprep.subr.bf16.mxu0 0
    %645 = vmatpush2.bf16.msra.mxu0 %v484
    %646 = vmatprep.subr.bf16.mxu0 0
    %647 = vmatpush2.bf16.msra.mxu0 %v483
    %648 = vmatprep.subr.bf16.mxu0 0
    %649 = vmatpush2.bf16.msra.mxu0 %v482
    %650 = vmatprep.subr.bf16.mxu0 0
    %651 = vmatpush2.bf16.msra.mxu0 %v481
    %652 = vmatprep.subr.bf16.mxu0 0
    %653 = vmatpush2.bf16.msra.mxu0 %v480
    %654 = vmatprep.subr.bf16.mxu0 0
    %655 = vmatpush2.bf16.msra.mxu0 %v479
    %656 = vmatprep.mubr.bf16.mxu0 %v66
    %657 = vmatmul.mubr.bf16.gmra.mxu0 %v65
    %v658 = vpop.f32.mrf.mxu0
    %v659 = vadd.f32 %v618, %v658
    %v660 = vpop.f32.mrf.mxu0
    %v661 = vpop.f32.mrf.mxu0
    %v662 = vadd.f32 %v621, %v661
    %v663 = vpop.f32.mrf.mxu0
    %664 = vdwg.mxu0
    %665 = vmatprep.subr.bf16.mxu0 0
    %666 = vmatpush1.bf16.msra.mxu0 %v494
    %667 = vmatprep.subr.bf16.mxu0 0
    %668 = vmatpush1.bf16.msra.mxu0 %v493
    %669 = vmatprep.subr.bf16.mxu0 0
    %670 = vmatpush1.bf16.msra.mxu0 %v492
    %671 = vmatprep.subr.bf16.mxu0 0
    %672 = vmatpush1.bf16.msra.mxu0 %v491
    %673 = vmatprep.subr.bf16.mxu0 0
    %674 = vmatpush1.bf16.msra.mxu0 %v490
    %675 = vmatprep.subr.bf16.mxu0 0
    %676 = vmatpush1.bf16.msra.mxu0 %v489
    %677 = vmatprep.subr.bf16.mxu0 0
    %678 = vmatpush1.bf16.msra.mxu0 %v488
    %679 = vmatprep.subr.bf16.mxu0 0
    %680 = vmatpush1.bf16.msra.mxu0 %v487
    %681 = vmatprep.subr.bf16.mxu0 0
    %682 = vmatpush2.bf16.msra.mxu0 %v502
    %683 = vmatprep.subr.bf16.mxu0 0
    %684 = vmatpush2.bf16.msra.mxu0 %v501
    %685 = vmatprep.subr.bf16.mxu0 0
    %686 = vmatpush2.bf16.msra.mxu0 %v500
    %687 = vmatprep.subr.bf16.mxu0 0
    %688 = vmatpush2.bf16.msra.mxu0 %v499
    %689 = vmatprep.subr.bf16.mxu0 0
    %690 = vmatpush2.bf16.msra.mxu0 %v498
    %691 = vmatprep.subr.bf16.mxu0 0
    %692 = vmatpush2.bf16.msra.mxu0 %v497
    %693 = vmatprep.subr.bf16.mxu0 0
    %694 = vmatpush2.bf16.msra.mxu0 %v496
    %695 = vmatprep.subr.bf16.mxu0 0
    %696 = vmatpush2.bf16.msra.mxu0 %v495
    %697 = vmatprep.mubr.bf16.mxu0 %v68
    %698 = vmatmul.mubr.bf16.gmra.mxu0 %v67
    %v699 = vpop.f32.mrf.mxu0
    %v700 = vadd.f32 %v659, %v699
    %v701 = vpop.f32.mrf.mxu0
    %v702 = vpop.f32.mrf.mxu0
    %v703 = vadd.f32 %v662, %v702
    %v704 = vpop.f32.mrf.mxu0
    %705 = vdwg.mxu0
    %706 = vmatprep.subr.bf16.mxu0 0
    %707 = vmatpush1.bf16.msra.mxu0 %v510
    %708 = vmatprep.subr.bf16.mxu0 0
    %709 = vmatpush1.bf16.msra.mxu0 %v509
    %710 = vmatprep.subr.bf16.mxu0 0
    %711 = vmatpush1.bf16.msra.mxu0 %v508
    %712 = vmatprep.subr.bf16.mxu0 0
    %713 = vmatpush1.bf16.msra.mxu0 %v507
    %714 = vmatprep.subr.bf16.mxu0 0
    %715 = vmatpush1.bf16.msra.mxu0 %v506
    %716 = vmatprep.subr.bf16.mxu0 0
    %717 = vmatpush1.bf16.msra.mxu0 %v505
    %718 = vmatprep.subr.bf16.mxu0 0
    %719 = vmatpush1.bf16.msra.mxu0 %v504
    %720 = vmatprep.subr.bf16.mxu0 0
    %721 = vmatpush1.bf16.msra.mxu0 %v503
    %722 = vmatprep.subr.bf16.mxu0 0
    %723 = vmatpush2.bf16.msra.mxu0 %v518
    %724 = vmatprep.subr.bf16.mxu0 0
    %725 = vmatpush2.bf16.msra.mxu0 %v517
    %726 = vmatprep.subr.bf16.mxu0 0
    %727 = vmatpush2.bf16.msra.mxu0 %v516
    %728 = vmatprep.subr.bf16.mxu0 0
    %729 = vmatpush2.bf16.msra.mxu0 %v515
    %730 = vmatprep.subr.bf16.mxu0 0
    %731 = vmatpush2.bf16.msra.mxu0 %v514
    %732 = vmatprep.subr.bf16.mxu0 0
    %733 = vmatpush2.bf16.msra.mxu0 %v513
    %734 = vmatprep.subr.bf16.mxu0 0
    %735 = vmatpush2.bf16.msra.mxu0 %v512
    %736 = vmatprep.subr.bf16.mxu0 0
    %737 = vmatpush2.bf16.msra.mxu0 %v511
    %738 = vmatprep.mubr.bf16.mxu0 %v70
    %739 = vmatmul.mubr.bf16.gmra.mxu0 %v69
    %v740 = vpop.f32.mrf.mxu0
    %v741 = vadd.f32 %v700, %v740
    %v742 = vpop.f32.mrf.mxu0
    %v743 = vpop.f32.mrf.mxu0
    %v744 = vadd.f32 %v703, %v743
    %v745 = vpop.f32.mrf.mxu0
    %746 = vdwg.mxu0
    %v747 = vmul.f32 %v741, %v741
    %v748 = vmul.f32 %v744, %v744
    %749 = vadd.xlane.f32.xlu0 %v747
    %v750 = vpop.xlane.xlu0 %749
    %751 = vadd.xlane.f32.xlu0 %v748
    %v752 = vpop.xlane.xlu0 %751
    %v753 = vadd.f32 %v750, 1e-12
    %v754 = vadd.f32 %v752, 1e-12
    %v755 = vrsqrt.pop %v753
    %v756 = vrsqrt.pop %v754
    %v757 = vmul.f32 %v741, %v755
    %v758 = vmul.f32 %v744, %v756
    %v759 = vpack.c.bf16 %v758, %v757
    %v761 = vunpack.c.l.b16 %v759
    %v762 = vunpack.c.h.b16 %v759
    %v763 = vpack.c.b16 %v761, %v761
    %v764 = vpack.c.b16 %v762, %v762
    %767 = vst [vmem:[#allocation7] sm:$0xf] %v763
    %768 = vst [vmem:[#allocation7 + $0x4] sm:$0xf] %v764
    %v769 = vld [vmem:[%s2] sm:$0x1]
    %v770 = vpack.c.bf16 %v769, %v769
    %771 = vmatprep.subr.bf16.mxu0 0
    %772 = vmatpush1.bf16.xpose.msra.mxu0 0
    %773 = vmatprep.subr.bf16.mxu0 0
    %774 = vmatpush1.bf16.xpose.msra.mxu0 0
    %775 = vmatprep.subr.bf16.mxu0 0
    %776 = vmatpush1.bf16.xpose.msra.mxu0 0
    %777 = vmatprep.subr.bf16.mxu0 0
    %778 = vmatpush1.bf16.xpose.msra.mxu0 0
    %779 = vmatprep.subr.bf16.mxu0 0
    %780 = vmatpush1.bf16.xpose.msra.mxu0 0
    %781 = vmatprep.subr.bf16.mxu0 0
    %782 = vmatpush1.bf16.xpose.msra.mxu0 0
    %783 = vmatprep.subr.bf16.mxu0 0
    %784 = vmatpush1.bf16.xpose.msra.mxu0 0
    %785 = vmatprep.subr.bf16.mxu0 0
    %786 = vmatpush1.bf16.xpose.msra.mxu0 %v759
    %787 = vmatprep.subr.bf16.mxu0 0
    %788 = vmatpush2.bf16.xpose.msra.mxu0 0
    %789 = vmatprep.subr.bf16.mxu0 0
    %790 = vmatpush2.bf16.xpose.msra.mxu0 0
    %791 = vmatprep.subr.bf16.mxu0 0
    %792 = vmatpush2.bf16.xpose.msra.mxu0 0
    %793 = vmatprep.subr.bf16.mxu0 0
    %794 = vmatpush2.bf16.xpose.msra.mxu0 0
    %795 = vmatprep.subr.bf16.mxu0 0
    %796 = vmatpush2.bf16.xpose.msra.mxu0 0
    %797 = vmatprep.subr.bf16.mxu0 0
    %798 = vmatpush2.bf16.xpose.msra.mxu0 0
    %799 = vmatprep.subr.bf16.mxu0 0
    %800 = vmatpush2.bf16.xpose.msra.mxu0 0
    %801 = vmatprep.subr.bf16.mxu0 0
    %802 = vmatpush2.bf16.xpose.msra.mxu0 0
    %803 = vmatprep.mubr.bf16.mxu0 0
    %804 = vmatmul.mubr.bf16.gmra.mxu0 %v770
    %v805 = vpop.f32.mrf.mxu0
    %v806 = vadd.f32 0.0, %v805
    %v807 = vpop.f32.mrf.mxu0
    %v808 = vpop.f32.mrf.mxu0
    %v809 = vpop.f32.mrf.mxu0
    %810 = vdwg.mxu0
    %vm811 = vcmask 122880
    %812 = vst.msk [vmem:[#allocation8] sm:$0x1] %vm811, %v806
    // Predicated region
    $region22: #{tpu_custom_call.1} parent=1 // pred_check
      _
    $region23: #{tpu_custom_call.1} parent=1 // pred_check_branch
      %814 = sbr.rel (0) target = $region25
    $region24: #{tpu_custom_call.1} parent=1 // pred_region
      %s816 = ssub.s32 128, 128
      %817 = vsyncadd [#allocation4], %s816
      %s818 = sshll.u32 [#allocation7], 4
      %s819 = int_to_ptr.vmem [resolvable:$true] %s818
      %824 = dma.vmem_to_hbm [thread:$0]  %s819, 128, %s3, [#allocation4], 64, 64, 4
    $region25: #{tpu_custom_call.1} parent=1 // pred_fallthru
      _
    // Predicated region
    $region26: #{tpu_custom_call.1} parent=1 // pred_check
      _
    $region27: #{tpu_custom_call.1} parent=1 // pred_check_branch
      %826 = sbr.rel (0) target = $region29
    $region28: #{tpu_custom_call.1} parent=1 // pred_region
      %s828 = ssub.s32 16, 16
      %829 = vsyncadd [#allocation9], %s828
      %s831 = sshll.u32 [#allocation8], 4
      %s832 = int_to_ptr.vmem [resolvable:$true] %s831
      %834 = dma.vmem_to_hbm [thread:$0]  %s832, 16, %s4, [#allocation9]
    $region29: #{tpu_custom_call.1} parent=1 // pred_fallthru
      _
    // Predicated region
    $region30: #{tpu_custom_call.1} parent=1 // pred_check
      _
    $region31: #{tpu_custom_call.1} parent=1 // pred_check_branch
      %836 = sbr.rel (0) target = $region33
    $region32: #{tpu_custom_call.1} parent=1 // pred_region
      %837 = dma.done [#allocation4], 128
    $region33: #{tpu_custom_call.1} parent=1 // pred_fallthru
      _
    // Predicated region
    $region34: #{tpu_custom_call.1} parent=1 // pred_check
      _
    $region35: #{tpu_custom_call.1} parent=1 // pred_check_branch
      %839 = sbr.rel (0) target = $region37
    $region36: #{tpu_custom_call.1} parent=1 // pred_region
      %840 = dma.done [#allocation9], 16
    $region37: #{tpu_custom_call.1} parent=1 // pred_fallthru
      _
    %841 = vsyncpa [#allocation3], 1
    %842 = vsyncpa [#allocation6], 1
    %843 = vsyncpa [#allocation4], 1
    %844 = vsyncpa [#allocation9], 1

</llo_original>
